<compile_context>
chip_gen: v6e
topology: v6e:2x2x1
jax: 0.10.0
libtpu: 0.0.40
codegen_flags: <defaults>
</compile_context>

<pallas_src>
import jax
import jax.numpy as jnp
from jax.experimental import pallas as pl
from jax.experimental.pallas import tpu as pltpu


def _round_up(x, m):
    return ((x + m - 1) // m) * m


def _pick_tile_b(b_pad, tile_b_max, min_tiles=2):
    """Largest multiple of 128 that divides b_pad and is <= tile_b_max.

    Prefers a tile that leaves >= min_tiles grid steps so the "parallel" batch axis
    can be split across both v7x TensorCores; on v5e/v6e the extra grid step costs
    ~0.35us, which is noise for this kernel.
    """
    tile_b_max = max(128, tile_b_max)
    divisors = [t for t in range(128, min(b_pad, tile_b_max) + 1, 128) if b_pad % t == 0]
    multi = [t for t in divisors if b_pad // t >= min_tiles]
    return max(multi) if multi else max(divisors)


def critic_kernel(state_ref, action_ref, w1_ref, b1_ref, w2_ref, b2_ref,
                  wq_ref, bq_ref, q_ref):
    # torch.cat((state, action), dim=1) fused in VMEM -> single K=cat_dims MXU pass for fc1.
    x = jnp.concatenate([state_ref[...], action_ref[...]], axis=-1)

    # h1 = relu(x @ W1 + b1)   (f32 accumulation regardless of input dtype)
    h1 = jnp.dot(x, w1_ref[...], preferred_element_type=jnp.float32) + b1_ref[...]
    h1 = jnp.maximum(h1, 0.0)

    # h2 = relu(h1 @ W2 + b2)
    h2 = jnp.dot(h1, w2_ref[...], preferred_element_type=jnp.float32) + b2_ref[...]
    h2 = jnp.maximum(h2, 0.0)

    # q head (out_features == 1): VPU multiply + XLU lane reduction, bq scalar from SMEM.
    q_col = jnp.sum(h2 * wq_ref[...], axis=-1, keepdims=True) + bq_ref[0, 0]  # (tile_b, 1)

    # Lane-dense store: batch maps to the lane dimension of the (1, tile_b) output block.
    q_ref[...] = q_col.T.astype(q_ref.dtype)


def critic_forward(state, action, params, *, tile_b_max=4096):
    """Fused CriticNetwork.forward as a single batch-tiled Pallas TPU kernel.

    params = (w1, b1, w2, b2, wq_row, bq) with weights stored as (in_features, out_features),
    wq_row as a (1, fc2) row and bq as a (1, 1) scalar.
    state/action may be f32 or bf16 (no wrapper-side cast); accumulation is f32 in-kernel.
    Returns q of shape (B, 1), matching the PyTorch module.
    """
    w1, b1, w2, b2, wq, bq = params

    B, input_dims = state.shape
    act_dims = action.shape[1]
    cat_dims = w1.shape[0]
    fc1 = w1.shape[1]
    fc2 = w2.shape[1]
    assert cat_dims == input_dims + act_dims

    # Pad only to the 128-lane boundary (NOT to a multiple of tile_b).  Callers that
    # supply a 128-aligned batch skip this copy (and its extra HBM pass) entirely.
    b_pad = _round_up(B, 128)
    if b_pad != B:
        state = jnp.pad(state, ((0, b_pad - B), (0, 0)))
        action = jnp.pad(action, ((0, b_pad - B), (0, 0)))

    tile_b = _pick_tile_b(b_pad, tile_b_max)
    num_tiles = b_pad // tile_b

    # Advisory cost estimate for XLA's scheduler.
    flops = 2 * b_pad * (cat_dims * fc1 + fc1 * fc2 + fc2)
    bytes_accessed = (state.dtype.itemsize * b_pad * cat_dims + 4 * b_pad
                      + w1.dtype.itemsize * (cat_dims * fc1 + fc1 + fc1 * fc2 + fc2 + fc2 + 1))

    grid_spec = pltpu.PrefetchScalarGridSpec(
        num_scalar_prefetch=0,
        grid=(num_tiles,),
        in_specs=[
            # Activations: tiled along the batch (lane dims equal the full array dims).
            pl.BlockSpec((tile_b, input_dims), lambda i: (i, 0)),
            pl.BlockSpec((tile_b, act_dims), lambda i: (i, 0)),
            # Weights / biases: constant index maps -> VMEM-resident across grid steps.
            pl.BlockSpec((cat_dims, fc1), lambda i: (0, 0)),
            pl.BlockSpec((1, fc1), lambda i: (0, 0)),
            pl.BlockSpec((fc1, fc2), lambda i: (0, 0)),
            pl.BlockSpec((1, fc2), lambda i: (0, 0)),
            pl.BlockSpec((1, fc2), lambda i: (0, 0)),        # wq as a (1, fc2) row
            # bq: a single scalar -> SMEM (no padded VMEM tile, no per-buffer DMA stream).
            pl.BlockSpec(memory_space=pltpu.MemorySpace.SMEM),
        ],
        # Lane-dense output: batch along lanes, one (1, tile_b) unmasked block per step.
        out_specs=pl.BlockSpec((1, tile_b), lambda i: (0, i)),
    )

    q_lane = pl.pallas_call(
        critic_kernel,
        out_shape=jax.ShapeDtypeStruct((1, b_pad), jnp.float32),
        grid_spec=grid_spec,
        compiler_params=pltpu.CompilerParams(
            # Batch axis is embarrassingly parallel -> lets v7x shard steps over both TCs.
            dimension_semantics=("parallel",)),
        cost_estimate=pl.CostEstimate(
            flops=flops, transcendentals=0, bytes_accessed=bytes_accessed),
    )(state, action, w1, b1, w2, b2, wq, bq)

    # (1, b_pad) lane-dense result -> (B, 1) to match the PyTorch module.
    return q_lane[0, :B, None]


def init_linear_params(key, in_features, out_features):
    """Deterministic init mimicking PyTorch nn.Linear default (U(-k, k), k=1/sqrt(in))."""
    kw, kb = jax.random.split(key)
    bound = 1.0 / (in_features ** 0.5)
    # Stored as (in, out) so the kernel computes x @ W directly on the MXU.
    w = jax.random.uniform(kw, (in_features, out_features), jnp.float32, -bound, bound)
    b = jax.random.uniform(kb, (1, out_features), jnp.float32, -bound, bound)
    return w, b


def _reference_forward(state, action, w1, b1, w2, b2, wq, bq):
    x = jnp.concatenate([state, action], axis=1)
    h = jnp.maximum(x @ w1 + b1, 0.0)
    h = jnp.maximum(h @ w2 + b2, 0.0)
    return h @ wq + bq


if __name__ == "__main__":
    # Small shapes consistent with the module's constructor.
    input_dims = 24
    n_agents = 2
    n_actions = 4
    fc1_dims = 64
    fc2_dims = 64   # must be 64 for self.q (Linear(64, 1)) to apply to the fc2 output
    act_dims = n_agents * n_actions
    cat_dims = input_dims + act_dims

    root = jax.random.PRNGKey(0)
    k_state, k_action, k1, k2, kq = jax.random.split(root, 5)

    w1, b1 = init_linear_params(k1, cat_dims, fc1_dims)
    w2, b2 = init_linear_params(k2, fc1_dims, fc2_dims)
    wq, bq = init_linear_params(kq, fc2_dims, 1)
    params = (w1, b1, w2, b2, wq.T, bq)   # wq passed as a (1, fc2) row for the VPU head

    ok = True
    # Case 1: tiny, non-128-aligned batch (exercises the minimal 128-lane pad path).
    # Case 2: 128-aligned batch (no pad copy, >= 2 grid steps for the parallel axis).
    for batch in (8, 512):
        state = jax.random.normal(k_state, (batch, input_dims), jnp.float32)
        action = jax.random.normal(k_action, (batch, act_dims), jnp.float32)

        q = critic_forward(state, action, params)
        q = jax.block_until_ready(q)

        ref = _reference_forward(state, action, w1, b1, w2, b2, wq, bq)
        ok &= (q.shape == (batch, 1))
        ok &= bool(jnp.allclose(q, ref, atol=2e-5, rtol=2e-5))

    assert ok
    print("KERNEL_OK")
</pallas_src>

<mosaic_0001>
module attributes {stable_mosaic.version = 11 : i64} {
  func.func @critic_kernel(%arg0: i32, %arg1: memref<128x24xf32, #tpu.memory_space<vmem>>, %arg2: memref<128x8xf32, #tpu.memory_space<vmem>>, %arg3: memref<32x64xf32, #tpu.memory_space<vmem>>, %arg4: memref<1x64xf32, #tpu.memory_space<vmem>>, %arg5: memref<64x64xf32, #tpu.memory_space<vmem>>, %arg6: memref<1x64xf32, #tpu.memory_space<vmem>>, %arg7: memref<1x64xf32, #tpu.memory_space<vmem>>, %arg8: memref<1x1xf32, #tpu.memory_space<smem>>, %arg9: memref<1x128xf32, #tpu.memory_space<vmem>>) attributes {dimension_semantics = [#tpu.dimension_semantics<parallel>], iteration_bounds = array<i64: 1>, scalar_prefetch = 0 : i64, scratch_operands = 0 : i64, tpu.core_type = #tpu.core_type<tc>, window_params = [{transform_indices = @transform_0, window_bounds = array<i64: 128, 24>}, {transform_indices = @transform_1, window_bounds = array<i64: 128, 8>}, {pipeline_mode = #tpu.pipeline_mode<synchronous>, transform_indices = @transform_2, window_bounds = array<i64: 32, 64>}, {pipeline_mode = #tpu.pipeline_mode<synchronous>, transform_indices = @transform_3, window_bounds = array<i64: 1, 64>}, {pipeline_mode = #tpu.pipeline_mode<synchronous>, transform_indices = @transform_4, window_bounds = array<i64: 64, 64>}, {pipeline_mode = #tpu.pipeline_mode<synchronous>, transform_indices = @transform_5, window_bounds = array<i64: 1, 64>}, {pipeline_mode = #tpu.pipeline_mode<synchronous>, transform_indices = @transform_6, window_bounds = array<i64: 1, 64>}, {transform_indices = @transform_7, window_bounds = array<i64: 1, 1>}, {transform_indices = @transform_8, window_bounds = array<i64: 1, 128>}]} {
    %c0 = arith.constant 0 : index
    %c0_0 = arith.constant 0 : index
    %0 = vector.load %arg1[%c0, %c0_0] : memref<128x24xf32, #tpu.memory_space<vmem>>, vector<128x24xf32>
    %c0_1 = arith.constant 0 : index
    %c0_2 = arith.constant 0 : index
    %1 = vector.load %arg2[%c0_1, %c0_2] : memref<128x8xf32, #tpu.memory_space<vmem>>, vector<128x8xf32>
    %2 = tpu.concatenate %0, %1 in 1 : vector<128x24xf32>, vector<128x8xf32> -> vector<128x32xf32>
    %c0_3 = arith.constant 0 : index
    %c0_4 = arith.constant 0 : index
    %3 = vector.load %arg3[%c0_3, %c0_4] : memref<32x64xf32, #tpu.memory_space<vmem>>, vector<32x64xf32>
    %cst = arith.constant dense<0.000000e+00> : vector<128x64xf32>
    %4 = tpu.matmul %2, %3, %cst {dimension_numbers = #tpu.dot_dimension_numbers<[1], [0], [0], [1], [0, 0, 1, 1], [], []>} : vector<128x32xf32>, vector<32x64xf32>, vector<128x64xf32> -> vector<128x64xf32>
    %c0_5 = arith.constant 0 : index
    %c0_6 = arith.constant 0 : index
    %5 = vector.load %arg4[%c0_5, %c0_6] : memref<1x64xf32, #tpu.memory_space<vmem>>, vector<1x64xf32>
    %6 = vector.broadcast %5 : vector<1x64xf32> to vector<128x64xf32>
    %7 = arith.addf %4, %6 : vector<128x64xf32>
    %cst_7 = arith.constant 0.000000e+00 : f32
    %8 = vector.broadcast %cst_7 : f32 to vector<128x64xf32>
    %9 = arith.maximumf %7, %8 : vector<128x64xf32>
    %c0_8 = arith.constant 0 : index
    %c0_9 = arith.constant 0 : index
    %10 = vector.load %arg5[%c0_8, %c0_9] : memref<64x64xf32, #tpu.memory_space<vmem>>, vector<64x64xf32>
    %cst_10 = arith.constant dense<0.000000e+00> : vector<128x64xf32>
    %11 = tpu.matmul %9, %10, %cst_10 {dimension_numbers = #tpu.dot_dimension_numbers<[1], [0], [0], [1], [0, 0, 1, 1], [], []>} : vector<128x64xf32>, vector<64x64xf32>, vector<128x64xf32> -> vector<128x64xf32>
    %c0_11 = arith.constant 0 : index
    %c0_12 = arith.constant 0 : index
    %12 = vector.load %arg6[%c0_11, %c0_12] : memref<1x64xf32, #tpu.memory_space<vmem>>, vector<1x64xf32>
    %13 = vector.broadcast %12 : vector<1x64xf32> to vector<128x64xf32>
    %14 = arith.addf %11, %13 : vector<128x64xf32>
    %cst_13 = arith.constant 0.000000e+00 : f32
    %15 = vector.broadcast %cst_13 : f32 to vector<128x64xf32>
    %16 = arith.maximumf %14, %15 : vector<128x64xf32>
    %c0_14 = arith.constant 0 : index
    %c0_15 = arith.constant 0 : index
    %17 = vector.load %arg7[%c0_14, %c0_15] : memref<1x64xf32, #tpu.memory_space<vmem>>, vector<1x64xf32>
    %18 = vector.broadcast %17 : vector<1x64xf32> to vector<128x64xf32>
    %19 = arith.mulf %16, %18 : vector<128x64xf32>
    %cst_16 = arith.constant dense<0.000000e+00> : vector<128xf32>
    %20 = vector.multi_reduction <add>, %19, %cst_16 [1] : vector<128x64xf32> to vector<128xf32>
    %21 = vector.shape_cast %20 : vector<128xf32> to vector<128x1xf32>
    %c0_17 = arith.constant 0 : index
    %c0_18 = arith.constant 0 : index
    %22 = memref.load %arg8[%c0_17, %c0_18] : memref<1x1xf32, #tpu.memory_space<smem>>
    %23 = vector.broadcast %22 : f32 to vector<128x1xf32>
    %24 = arith.addf %21, %23 : vector<128x1xf32>
    %25 = tpu.transpose %24, [1, 0] : vector<128x1xf32> -> vector<1x128xf32>
    %c0_19 = arith.constant 0 : index
    %c0_20 = arith.constant 0 : index
    %26 = vector.load %arg9[%c0_19, %c0_20] : memref<1x128xf32, #tpu.memory_space<vmem>>, vector<1x128xf32>
    tpu.vector_store %arg9[%c0_19, %c0_20], %25 {strides = array<i32>} : memref<1x128xf32, #tpu.memory_space<vmem>>, vector<1x128xf32>,
    return
  }
  func.func @transform_0(%arg0: i32) -> (i32, i32) {
    %c0_i32 = arith.constant 0 : i32
    %c0_i32_0 = arith.constant 0 : i32
    return %arg0, %c0_i32 : i32, i32
  }
  func.func @transform_1(%arg0: i32) -> (i32, i32) {
    %c0_i32 = arith.constant 0 : i32
    %c0_i32_0 = arith.constant 0 : i32
    return %arg0, %c0_i32 : i32, i32
  }
  func.func @transform_2(%arg0: i32) -> (i32, i32) {
    %c0_i32 = arith.constant 0 : i32
    %c0_i32_0 = arith.constant 0 : i32
    %c0_i32_1 = arith.constant 0 : i32
    return %c0_i32, %c0_i32_0 : i32, i32
  }
  func.func @transform_3(%arg0: i32) -> (i32, i32) {
    %c0_i32 = arith.constant 0 : i32
    %c0_i32_0 = arith.constant 0 : i32
    %c0_i32_1 = arith.constant 0 : i32
    return %c0_i32, %c0_i32_0 : i32, i32
  }
  func.func @transform_4(%arg0: i32) -> (i32, i32) {
    %c0_i32 = arith.constant 0 : i32
    %c0_i32_0 = arith.constant 0 : i32
    %c0_i32_1 = arith.constant 0 : i32
    return %c0_i32, %c0_i32_0 : i32, i32
  }
  func.func @transform_5(%arg0: i32) -> (i32, i32) {
    %c0_i32 = arith.constant 0 : i32
    %c0_i32_0 = arith.constant 0 : i32
    %c0_i32_1 = arith.constant 0 : i32
    return %c0_i32, %c0_i32_0 : i32, i32
  }
  func.func @transform_6(%arg0: i32) -> (i32, i32) {
    %c0_i32 = arith.constant 0 : i32
    %c0_i32_0 = arith.constant 0 : i32
    %c0_i32_1 = arith.constant 0 : i32
    return %c0_i32, %c0_i32_0 : i32, i32
  }
  func.func @transform_7(%arg0: i32) -> (i32, i32) {
    %c0_i32 = arith.constant 0 : i32
    %c0_i32_0 = arith.constant 0 : i32
    %c0_i32_1 = arith.constant 0 : i32
    return %c0_i32, %c0_i32_0 : i32, i32
  }
  func.func @transform_8(%arg0: i32) -> (i32, i32) {
    %c0_i32 = arith.constant 0 : i32
    %c0_i32_0 = arith.constant 0 : i32
    return %c0_i32, %arg0 : i32, i32
  }
}

</mosaic_0001>

<llo_original>
// kernel: tpu_custom_call.1
$region0: #{tpu_custom_call.1}
  #allocation0 [shape = 'u32[]', space=smem, size = 0x4, offset = 0x4, fixed_abs, tag = 'smem constant byte address 0x4 - core index']
  #allocation1 [shape = 'u32[144,128]{1,0:T(1,128)}', space=vmem, size = 0x12000, scoped, tag = 'internal scratch']
  #allocation2 [shape = 'f32[1,1]{1,0:T(1,128)S(6)}', space=smem, size = 0x200, scoped, tag = 'scoped memory for tpu_custom_call.1']
  %s0 = inlined_call_operand.vmem [shape: f32[128,24], index: 0, kind: input, shape index: {}]
  %s1 = inlined_call_operand.vmem [shape: f32[128,8], index: 1, kind: input, shape index: {}]
  %s2 = inlined_call_operand.vmem [shape: f32[32,64], index: 2, kind: input, shape index: {}]
  %s3 = inlined_call_operand.vmem [shape: f32[1,64], index: 3, kind: input, shape index: {}]
  %s4 = inlined_call_operand.vmem [shape: f32[64,64], index: 4, kind: input, shape index: {}]
  %s5 = inlined_call_operand.vmem [shape: f32[1,64], index: 5, kind: input, shape index: {}]
  %s6 = inlined_call_operand.vmem [shape: f32[1,64], index: 6, kind: input, shape index: {}]
  %s7 = inlined_call_operand.<no memory space> [shape: f32[1,1], index: 7, kind: input, shape index: {}]
  %s8 = inlined_call_operand.hbm [shape: f32[1,128], index: 8, kind: output, shape index: {}]
  %s9 = sld [smem:[#allocation0]]
  $region42: #{tpu_custom_call.1} parent=0
    _
  %s11 = ssub.s32 1, %s9
  %s12 = scalar_select 0, %s11, %s9
  %13 = sst [smem:[#allocation2]] %s7
  $region1: #{tpu_custom_call.1} parent=0
    #allocation3 [shape = 'u8[512]{0}', space=vmem, size = 0x400, scoped, tag = 'output window, operand 0, single buffered']
    #allocation4 [shape = 's32[1]{0}', space=sflag, size = 0x4, scoped, tag = 'scoped memory for tpu_custom_call.1']
    %14 = vsyncpa [#allocation4], 0
    // Predicated region
    $region2: #{tpu_custom_call.1} parent=1 // pred_check
      _
    $region3: #{tpu_custom_call.1} parent=1 // pred_check_branch
      %16 = sbr.rel (0) target = $region5
    $region4: #{tpu_custom_call.1} parent=1 // pred_region
      _
    $region5: #{tpu_custom_call.1} parent=1 // pred_fallthru
      _
    // Predicated region
    $region6: #{tpu_custom_call.1} parent=1 // pred_check
      _
    $region7: #{tpu_custom_call.1} parent=1 // pred_check_branch
      %18 = sbr.rel (0) target = $region9
    $region8: #{tpu_custom_call.1} parent=1 // pred_region
      _
    $region9: #{tpu_custom_call.1} parent=1 // pred_fallthru
      _
    // Predicated region
    $region10: #{tpu_custom_call.1} parent=1 // pred_check
      _
    $region11: #{tpu_custom_call.1} parent=1 // pred_check_branch
      %20 = sbr.rel (0) target = $region13
    $region12: #{tpu_custom_call.1} parent=1 // pred_region
      _
    $region13: #{tpu_custom_call.1} parent=1 // pred_fallthru
      _
    // Predicated region
    $region14: #{tpu_custom_call.1} parent=1 // pred_check
      _
    $region15: #{tpu_custom_call.1} parent=1 // pred_check_branch
      %22 = sbr.rel (0) target = $region17
    $region16: #{tpu_custom_call.1} parent=1 // pred_region
      _
    $region17: #{tpu_custom_call.1} parent=1 // pred_fallthru
      _
    // Predicated region
    $region18: #{tpu_custom_call.1} parent=1 // pred_check
      _
    $region19: #{tpu_custom_call.1} parent=1 // pred_check_branch
      %24 = sbr.rel (0) target = $region21
    $region20: #{tpu_custom_call.1} parent=1 // pred_region
      _
    $region21: #{tpu_custom_call.1} parent=1 // pred_fallthru
      _
    // Predicated region
    $region22: #{tpu_custom_call.1} parent=1 // pred_check
      _
    $region23: #{tpu_custom_call.1} parent=1 // pred_check_branch
      %26 = sbr.rel (0) target = $region25
    $region24: #{tpu_custom_call.1} parent=1 // pred_region
      _
    $region25: #{tpu_custom_call.1} parent=1 // pred_fallthru
      _
    // Predicated region
    $region26: #{tpu_custom_call.1} parent=1 // pred_check
      _
    $region27: #{tpu_custom_call.1} parent=1 // pred_check_branch
      %28 = sbr.rel (0) target = $region29
    $region28: #{tpu_custom_call.1} parent=1 // pred_region
      _
    $region29: #{tpu_custom_call.1} parent=1 // pred_fallthru
      _
    // Predicated region
    $region30: #{tpu_custom_call.1} parent=1 // pred_check
      _
    $region31: #{tpu_custom_call.1} parent=1 // pred_check_branch
      %30 = sbr.rel (0) target = $region33
    $region32: #{tpu_custom_call.1} parent=1 // pred_region
      _
    $region33: #{tpu_custom_call.1} parent=1 // pred_fallthru
      _
    %v31 = vld [vmem:[%s0] sm:$0xff]
    %v32 = vld [vmem:[%s0 + $0x8] sm:$0xff]
    %v33 = vld [vmem:[%s0 + $0x10] sm:$0xff]
    %v34 = vld [vmem:[%s0 + $0x18] sm:$0xff]
    %v35 = vld [vmem:[%s0 + $0x20] sm:$0xff]
    %v36 = vld [vmem:[%s0 + $0x28] sm:$0xff]
    %v37 = vld [vmem:[%s0 + $0x30] sm:$0xff]
    %v38 = vld [vmem:[%s0 + $0x38] sm:$0xff]
    %v39 = vld [vmem:[%s0 + $0x40] sm:$0xff]
    %v40 = vld [vmem:[%s0 + $0x48] sm:$0xff]
    %v41 = vld [vmem:[%s0 + $0x50] sm:$0xff]
    %v42 = vld [vmem:[%s0 + $0x58] sm:$0xff]
    %v43 = vld [vmem:[%s0 + $0x60] sm:$0xff]
    %v44 = vld [vmem:[%s0 + $0x68] sm:$0xff]
    %v45 = vld [vmem:[%s0 + $0x70] sm:$0xff]
    %v46 = vld [vmem:[%s0 + $0x78] sm:$0xff]
    %v47 = vld [vmem:[%s1] sm:$0xff]
    %v48 = vld [vmem:[%s1 + $0x8] sm:$0xff]
    %v49 = vld [vmem:[%s1 + $0x10] sm:$0xff]
    %v50 = vld [vmem:[%s1 + $0x18] sm:$0xff]
    %v51 = vld [vmem:[%s1 + $0x20] sm:$0xff]
    %v52 = vld [vmem:[%s1 + $0x28] sm:$0xff]
    %v53 = vld [vmem:[%s1 + $0x30] sm:$0xff]
    %v54 = vld [vmem:[%s1 + $0x38] sm:$0xff]
    %v55 = vld [vmem:[%s1 + $0x40] sm:$0xff]
    %v56 = vld [vmem:[%s1 + $0x48] sm:$0xff]
    %v57 = vld [vmem:[%s1 + $0x50] sm:$0xff]
    %v58 = vld [vmem:[%s1 + $0x58] sm:$0xff]
    %v59 = vld [vmem:[%s1 + $0x60] sm:$0xff]
    %v60 = vld [vmem:[%s1 + $0x68] sm:$0xff]
    %v61 = vld [vmem:[%s1 + $0x70] sm:$0xff]
    %v62 = vld [vmem:[%s1 + $0x78] sm:$0xff]
    %79 = vrot.lane.b32.xlu0 %v47, 24
    %v80 = vpop.permute.xlu0 %79
    %81 = vrot.lane.b32.xlu0 %v48, 24
    %v82 = vpop.permute.xlu0 %81
    %83 = vrot.lane.b32.xlu0 %v49, 24
    %v84 = vpop.permute.xlu0 %83
    %85 = vrot.lane.b32.xlu0 %v50, 24
    %v86 = vpop.permute.xlu0 %85
    %87 = vrot.lane.b32.xlu0 %v51, 24
    %v88 = vpop.permute.xlu0 %87
    %89 = vrot.lane.b32.xlu0 %v52, 24
    %v90 = vpop.permute.xlu0 %89
    %91 = vrot.lane.b32.xlu0 %v53, 24
    %v92 = vpop.permute.xlu0 %91
    %93 = vrot.lane.b32.xlu0 %v54, 24
    %v94 = vpop.permute.xlu0 %93
    %95 = vrot.lane.b32.xlu0 %v55, 24
    %v96 = vpop.permute.xlu0 %95
    %97 = vrot.lane.b32.xlu0 %v56, 24
    %v98 = vpop.permute.xlu0 %97
    %99 = vrot.lane.b32.xlu0 %v57, 24
    %v100 = vpop.permute.xlu0 %99
    %101 = vrot.lane.b32.xlu0 %v58, 24
    %v102 = vpop.permute.xlu0 %101
    %103 = vrot.lane.b32.xlu0 %v59, 24
    %v104 = vpop.permute.xlu0 %103
    %105 = vrot.lane.b32.xlu0 %v60, 24
    %v106 = vpop.permute.xlu0 %105
    %107 = vrot.lane.b32.xlu0 %v61, 24
    %v108 = vpop.permute.xlu0 %107
    %109 = vrot.lane.b32.xlu0 %v62, 24
    %v110 = vpop.permute.xlu0 %109
    %vm127 = vcmask 195584
    %v128 = vsel %vm127, %v31, %v80
    %v129 = vsel %vm127, %v32, %v82
    %v130 = vsel %vm127, %v33, %v84
    %v131 = vsel %vm127, %v34, %v86
    %v132 = vsel %vm127, %v35, %v88
    %v133 = vsel %vm127, %v36, %v90
    %v134 = vsel %vm127, %v37, %v92
    %v135 = vsel %vm127, %v38, %v94
    %v136 = vsel %vm127, %v39, %v96
    %v137 = vsel %vm127, %v40, %v98
    %v138 = vsel %vm127, %v41, %v100
    %v139 = vsel %vm127, %v42, %v102
    %v140 = vsel %vm127, %v43, %v104
    %v141 = vsel %vm127, %v44, %v106
    %v142 = vsel %vm127, %v45, %v108
    %v143 = vsel %vm127, %v46, %v110
    %v144 = vld [vmem:[%s2] sm:$0xff]
    %v145 = vld [vmem:[%s2 + $0x8] sm:$0xff]
    %v146 = vld [vmem:[%s2 + $0x10] sm:$0xff]
    %v147 = vld [vmem:[%s2 + $0x18] sm:$0xff]
    %v148 = vld [vmem:[%s3] sm:$0x1]
    %v150 = vlaneseq
    %v151 = vshrl.u32 %v150, 7
    %v152 = vsub.s32 0, %v151
    %v153 = vrot.slane %v148, %v152
    %vm155 = vcmask 261120
    %v157 = vsel %vm155, %v128, 0
    %v160 = vsel %vm155, %v129, 0
    %v163 = vsel %vm155, %v130, 0
    %v166 = vsel %vm155, %v131, 0
    %v169 = vsel %vm155, %v132, 0
    %v172 = vsel %vm155, %v133, 0
    %v175 = vsel %vm155, %v134, 0
    %v178 = vsel %vm155, %v135, 0
    %v181 = vsel %vm155, %v136, 0
    %v184 = vsel %vm155, %v137, 0
    %v187 = vsel %vm155, %v138, 0
    %v190 = vsel %vm155, %v139, 0
    %v193 = vsel %vm155, %v140, 0
    %v196 = vsel %vm155, %v141, 0
    %v199 = vsel %vm155, %v142, 0
    %v202 = vsel %vm155, %v143, 0
    %204 = vmatprep.subr.mxu0 0.0
    %205 = vmatpush1.msra.mxu0 0.0
    %206 = vmatprep.subr.mxu0 0.0
    %207 = vmatpush1.msra.mxu0 0.0
    %208 = vmatprep.subr.mxu0 0.0
    %209 = vmatpush1.msra.mxu0 0.0
    %210 = vmatprep.subr.mxu0 0.0
    %211 = vmatpush1.msra.mxu0 0.0
    %212 = vmatprep.subr.mxu0 0.0
    %213 = vmatpush1.msra.mxu0 0.0
    %214 = vmatprep.subr.mxu0 0.0
    %215 = vmatpush1.msra.mxu0 0.0
    %216 = vmatprep.subr.mxu0 0.0
    %217 = vmatpush1.msra.mxu0 0.0
    %218 = vmatprep.subr.mxu0 0.0
    %219 = vmatpush1.msra.mxu0 0.0
    %220 = vmatprep.subr.mxu0 0.0
    %221 = vmatpush1.msra.mxu0 0.0
    %222 = vmatprep.subr.mxu0 0.0
    %223 = vmatpush1.msra.mxu0 0.0
    %224 = vmatprep.subr.mxu0 0.0
    %225 = vmatpush1.msra.mxu0 0.0
    %226 = vmatprep.subr.mxu0 0.0
    %227 = vmatpush1.msra.mxu0 0.0
    %228 = vmatprep.subr.mxu0 0.0
    %229 = vmatpush1.msra.mxu0 %v147
    %230 = vmatprep.subr.mxu0 0.0
    %231 = vmatpush1.msra.mxu0 %v146
    %232 = vmatprep.subr.mxu0 0.0
    %233 = vmatpush1.msra.mxu0 %v145
    %234 = vmatprep.subr.mxu0 0.0
    %235 = vmatpush1.msra.mxu0 %v144
    %236 = vmatprep.subr.mxu0 0.0
    %237 = vmatpush2.msra.mxu0 0.0
    %238 = vmatprep.subr.mxu0 0.0
    %239 = vmatpush2.msra.mxu0 0.0
    %240 = vmatprep.subr.mxu0 0.0
    %241 = vmatpush2.msra.mxu0 0.0
    %242 = vmatprep.subr.mxu0 0.0
    %243 = vmatpush2.msra.mxu0 0.0
    %244 = vmatprep.subr.mxu0 0.0
    %245 = vmatpush2.msra.mxu0 0.0
    %246 = vmatprep.subr.mxu0 0.0
    %247 = vmatpush2.msra.mxu0 0.0
    %248 = vmatprep.subr.mxu0 0.0
    %249 = vmatpush2.msra.mxu0 0.0
    %250 = vmatprep.subr.mxu0 0.0
    %251 = vmatpush2.msra.mxu0 0.0
    %252 = vmatprep.subr.mxu0 0.0
    %253 = vmatpush2.msra.mxu0 0.0
    %254 = vmatprep.subr.mxu0 0.0
    %255 = vmatpush2.msra.mxu0 0.0
    %256 = vmatprep.subr.mxu0 0.0
    %257 = vmatpush2.msra.mxu0 0.0
    %258 = vmatprep.subr.mxu0 0.0
    %259 = vmatpush2.msra.mxu0 0.0
    %260 = vmatprep.subr.mxu0 0.0
    %261 = vmatpush2.msra.mxu0 0.0
    %262 = vmatprep.subr.mxu0 0.0
    %263 = vmatpush2.msra.mxu0 0.0
    %264 = vmatprep.subr.mxu0 0.0
    %265 = vmatpush2.msra.mxu0 0.0
    %266 = vmatprep.subr.mxu0 0.0
    %267 = vmatpush2.msra.mxu0 0.0
    %268 = vmatprep.mubr.f32.mxu0 0.0
    %269 = vmatmul.mubr.f32.gmra.mxu0 %v157
    %v270 = vpop.f32.mrf.mxu0
    %v271 = vadd.f32 %v153, %v270
    %v272 = vpop.f32.mrf.mxu0
    %273 = vmatprep.mubr.f32.mxu0 0.0
    %274 = vmatmul.mubr.f32.gmra.mxu0 %v160
    %v275 = vpop.f32.mrf.mxu0
    %v276 = vadd.f32 %v153, %v275
    %v277 = vpop.f32.mrf.mxu0
    %278 = vmatprep.mubr.f32.mxu0 0.0
    %279 = vmatmul.mubr.f32.gmra.mxu0 %v163
    %v280 = vpop.f32.mrf.mxu0
    %v281 = vadd.f32 %v153, %v280
    %v282 = vpop.f32.mrf.mxu0
    %283 = vmatprep.mubr.f32.mxu0 0.0
    %284 = vmatmul.mubr.f32.gmra.mxu0 %v166
    %v285 = vpop.f32.mrf.mxu0
    %v286 = vadd.f32 %v153, %v285
    %v287 = vpop.f32.mrf.mxu0
    %288 = vmatprep.mubr.f32.mxu0 0.0
    %289 = vmatmul.mubr.f32.gmra.mxu0 %v169
    %v290 = vpop.f32.mrf.mxu0
    %v291 = vadd.f32 %v153, %v290
    %v292 = vpop.f32.mrf.mxu0
    %293 = vmatprep.mubr.f32.mxu0 0.0
    %294 = vmatmul.mubr.f32.gmra.mxu0 %v172
    %v295 = vpop.f32.mrf.mxu0
    %v296 = vadd.f32 %v153, %v295
    %v297 = vpop.f32.mrf.mxu0
    %298 = vmatprep.mubr.f32.mxu0 0.0
    %299 = vmatmul.mubr.f32.gmra.mxu0 %v175
    %v300 = vpop.f32.mrf.mxu0
    %v301 = vadd.f32 %v153, %v300
    %v302 = vpop.f32.mrf.mxu0
    %303 = vmatprep.mubr.f32.mxu0 0.0
    %304 = vmatmul.mubr.f32.gmra.mxu0 %v178
    %v305 = vpop.f32.mrf.mxu0
    %v306 = vadd.f32 %v153, %v305
    %v307 = vpop.f32.mrf.mxu0
    %308 = vmatprep.mubr.f32.mxu0 0.0
    %309 = vmatmul.mubr.f32.gmra.mxu0 %v181
    %v310 = vpop.f32.mrf.mxu0
    %v311 = vadd.f32 %v153, %v310
    %v312 = vpop.f32.mrf.mxu0
    %313 = vmatprep.mubr.f32.mxu0 0.0
    %314 = vmatmul.mubr.f32.gmra.mxu0 %v184
    %v315 = vpop.f32.mrf.mxu0
    %v316 = vadd.f32 %v153, %v315
    %v317 = vpop.f32.mrf.mxu0
    %318 = vmatprep.mubr.f32.mxu0 0.0
    %319 = vmatmul.mubr.f32.gmra.mxu0 %v187
    %v320 = vpop.f32.mrf.mxu0
    %v321 = vadd.f32 %v153, %v320
    %v322 = vpop.f32.mrf.mxu0
    %323 = vmatprep.mubr.f32.mxu0 0.0
    %324 = vmatmul.mubr.f32.gmra.mxu0 %v190
    %v325 = vpop.f32.mrf.mxu0
    %v326 = vadd.f32 %v153, %v325
    %v327 = vpop.f32.mrf.mxu0
    %328 = vmatprep.mubr.f32.mxu0 0.0
    %329 = vmatmul.mubr.f32.gmra.mxu0 %v193
    %v330 = vpop.f32.mrf.mxu0
    %v331 = vadd.f32 %v153, %v330
    %v332 = vpop.f32.mrf.mxu0
    %333 = vmatprep.mubr.f32.mxu0 0.0
    %334 = vmatmul.mubr.f32.gmra.mxu0 %v196
    %v335 = vpop.f32.mrf.mxu0
    %v336 = vadd.f32 %v153, %v335
    %v337 = vpop.f32.mrf.mxu0
    %338 = vmatprep.mubr.f32.mxu0 0.0
    %339 = vmatmul.mubr.f32.gmra.mxu0 %v199
    %v340 = vpop.f32.mrf.mxu0
    %v341 = vadd.f32 %v153, %v340
    %v342 = vpop.f32.mrf.mxu0
    %343 = vmatprep.mubr.f32.mxu0 0.0
    %344 = vmatmul.mubr.f32.gmra.mxu0 %v202
    %v345 = vpop.f32.mrf.mxu0
    %v346 = vadd.f32 %v153, %v345
    %v347 = vpop.f32.mrf.mxu0
    %348 = vdwg.mxu0
    %v349 = vmax.f32 %v271, 0.0
    %v350 = vmax.f32 %v276, 0.0
    %v351 = vmax.f32 %v281, 0.0
    %v352 = vmax.f32 %v286, 0.0
    %v353 = vmax.f32 %v291, 0.0
    %v354 = vmax.f32 %v296, 0.0
    %v355 = vmax.f32 %v301, 0.0
    %v356 = vmax.f32 %v306, 0.0
    %v357 = vmax.f32 %v311, 0.0
    %v358 = vmax.f32 %v316, 0.0
    %v359 = vmax.f32 %v321, 0.0
    %v360 = vmax.f32 %v326, 0.0
    %v361 = vmax.f32 %v331, 0.0
    %v362 = vmax.f32 %v336, 0.0
    %v363 = vmax.f32 %v341, 0.0
    %v364 = vmax.f32 %v346, 0.0
    %v365 = vld [vmem:[%s4] sm:$0xff]
    %v366 = vld [vmem:[%s4 + $0x8] sm:$0xff]
    %v367 = vld [vmem:[%s4 + $0x10] sm:$0xff]
    %v368 = vld [vmem:[%s4 + $0x18] sm:$0xff]
    %v369 = vld [vmem:[%s4 + $0x20] sm:$0xff]
    %v370 = vld [vmem:[%s4 + $0x28] sm:$0xff]
    %v371 = vld [vmem:[%s4 + $0x30] sm:$0xff]
    %v372 = vld [vmem:[%s4 + $0x38] sm:$0xff]
    %v373 = vld [vmem:[%s5] sm:$0x1]
    %v375 = vlaneseq
    %v376 = vshrl.u32 %v375, 7
    %v377 = vsub.s32 0, %v376
    %v378 = vrot.slane %v373, %v377
    %vm380 = vcmask 523264
    %v382 = vsel %vm380, %v349, 0
    %v385 = vsel %vm380, %v350, 0
    %v388 = vsel %vm380, %v351, 0
    %v391 = vsel %vm380, %v352, 0
    %v394 = vsel %vm380, %v353, 0
    %v397 = vsel %vm380, %v354, 0
    %v400 = vsel %vm380, %v355, 0
    %v403 = vsel %vm380, %v356, 0
    %v406 = vsel %vm380, %v357, 0
    %v409 = vsel %vm380, %v358, 0
    %v412 = vsel %vm380, %v359, 0
    %v415 = vsel %vm380, %v360, 0
    %v418 = vsel %vm380, %v361, 0
    %v421 = vsel %vm380, %v362, 0
    %v424 = vsel %vm380, %v363, 0
    %v427 = vsel %vm380, %v364, 0
    %429 = vmatprep.subr.mxu0 0.0
    %430 = vmatpush1.msra.mxu0 0.0
    %431 = vmatprep.subr.mxu0 0.0
    %432 = vmatpush1.msra.mxu0 0.0
    %433 = vmatprep.subr.mxu0 0.0
    %434 = vmatpush1.msra.mxu0 0.0
    %435 = vmatprep.subr.mxu0 0.0
    %436 = vmatpush1.msra.mxu0 0.0
    %437 = vmatprep.subr.mxu0 0.0
    %438 = vmatpush1.msra.mxu0 0.0
    %439 = vmatprep.subr.mxu0 0.0
    %440 = vmatpush1.msra.mxu0 0.0
    %441 = vmatprep.subr.mxu0 0.0
    %442 = vmatpush1.msra.mxu0 0.0
    %443 = vmatprep.subr.mxu0 0.0
    %444 = vmatpush1.msra.mxu0 0.0
    %445 = vmatprep.subr.mxu0 0.0
    %446 = vmatpush1.msra.mxu0 %v372
    %447 = vmatprep.subr.mxu0 0.0
    %448 = vmatpush1.msra.mxu0 %v371
    %449 = vmatprep.subr.mxu0 0.0
    %450 = vmatpush1.msra.mxu0 %v370
    %451 = vmatprep.subr.mxu0 0.0
    %452 = vmatpush1.msra.mxu0 %v369
    %453 = vmatprep.subr.mxu0 0.0
    %454 = vmatpush1.msra.mxu0 %v368
    %455 = vmatprep.subr.mxu0 0.0
    %456 = vmatpush1.msra.mxu0 %v367
    %457 = vmatprep.subr.mxu0 0.0
    %458 = vmatpush1.msra.mxu0 %v366
    %459 = vmatprep.subr.mxu0 0.0
    %460 = vmatpush1.msra.mxu0 %v365
    %461 = vmatprep.subr.mxu0 0.0
    %462 = vmatpush2.msra.mxu0 0.0
    %463 = vmatprep.subr.mxu0 0.0
    %464 = vmatpush2.msra.mxu0 0.0
    %465 = vmatprep.subr.mxu0 0.0
    %466 = vmatpush2.msra.mxu0 0.0
    %467 = vmatprep.subr.mxu0 0.0
    %468 = vmatpush2.msra.mxu0 0.0
    %469 = vmatprep.subr.mxu0 0.0
    %470 = vmatpush2.msra.mxu0 0.0
    %471 = vmatprep.subr.mxu0 0.0
    %472 = vmatpush2.msra.mxu0 0.0
    %473 = vmatprep.subr.mxu0 0.0
    %474 = vmatpush2.msra.mxu0 0.0
    %475 = vmatprep.subr.mxu0 0.0
    %476 = vmatpush2.msra.mxu0 0.0
    %477 = vmatprep.subr.mxu0 0.0
    %478 = vmatpush2.msra.mxu0 0.0
    %479 = vmatprep.subr.mxu0 0.0
    %480 = vmatpush2.msra.mxu0 0.0
    %481 = vmatprep.subr.mxu0 0.0
    %482 = vmatpush2.msra.mxu0 0.0
    %483 = vmatprep.subr.mxu0 0.0
    %484 = vmatpush2.msra.mxu0 0.0
    %485 = vmatprep.subr.mxu0 0.0
    %486 = vmatpush2.msra.mxu0 0.0
    %487 = vmatprep.subr.mxu0 0.0
    %488 = vmatpush2.msra.mxu0 0.0
    %489 = vmatprep.subr.mxu0 0.0
    %490 = vmatpush2.msra.mxu0 0.0
    %491 = vmatprep.subr.mxu0 0.0
    %492 = vmatpush2.msra.mxu0 0.0
    %493 = vmatprep.mubr.f32.mxu0 0.0
    %494 = vmatmul.mubr.f32.gmra.mxu0 %v382
    %v495 = vpop.f32.mrf.mxu0
    %v496 = vadd.f32 %v378, %v495
    %v497 = vpop.f32.mrf.mxu0
    %498 = vmatprep.mubr.f32.mxu0 0.0
    %499 = vmatmul.mubr.f32.gmra.mxu0 %v385
    %v500 = vpop.f32.mrf.mxu0
    %v501 = vadd.f32 %v378, %v500
    %v502 = vpop.f32.mrf.mxu0
    %503 = vmatprep.mubr.f32.mxu0 0.0
    %504 = vmatmul.mubr.f32.gmra.mxu0 %v388
    %v505 = vpop.f32.mrf.mxu0
    %v506 = vadd.f32 %v378, %v505
    %v507 = vpop.f32.mrf.mxu0
    %508 = vmatprep.mubr.f32.mxu0 0.0
    %509 = vmatmul.mubr.f32.gmra.mxu0 %v391
    %v510 = vpop.f32.mrf.mxu0
    %v511 = vadd.f32 %v378, %v510
    %v512 = vpop.f32.mrf.mxu0
    %513 = vmatprep.mubr.f32.mxu0 0.0
    %514 = vmatmul.mubr.f32.gmra.mxu0 %v394
    %v515 = vpop.f32.mrf.mxu0
    %v516 = vadd.f32 %v378, %v515
    %v517 = vpop.f32.mrf.mxu0
    %518 = vmatprep.mubr.f32.mxu0 0.0
    %519 = vmatmul.mubr.f32.gmra.mxu0 %v397
    %v520 = vpop.f32.mrf.mxu0
    %v521 = vadd.f32 %v378, %v520
    %v522 = vpop.f32.mrf.mxu0
    %523 = vmatprep.mubr.f32.mxu0 0.0
    %524 = vmatmul.mubr.f32.gmra.mxu0 %v400
    %v525 = vpop.f32.mrf.mxu0
    %v526 = vadd.f32 %v378, %v525
    %v527 = vpop.f32.mrf.mxu0
    %528 = vmatprep.mubr.f32.mxu0 0.0
    %529 = vmatmul.mubr.f32.gmra.mxu0 %v403
    %v530 = vpop.f32.mrf.mxu0
    %v531 = vadd.f32 %v378, %v530
    %v532 = vpop.f32.mrf.mxu0
    %533 = vmatprep.mubr.f32.mxu0 0.0
    %534 = vmatmul.mubr.f32.gmra.mxu0 %v406
    %v535 = vpop.f32.mrf.mxu0
    %v536 = vadd.f32 %v378, %v535
    %v537 = vpop.f32.mrf.mxu0
    %538 = vmatprep.mubr.f32.mxu0 0.0
    %539 = vmatmul.mubr.f32.gmra.mxu0 %v409
    %v540 = vpop.f32.mrf.mxu0
    %v541 = vadd.f32 %v378, %v540
    %v542 = vpop.f32.mrf.mxu0
    %543 = vmatprep.mubr.f32.mxu0 0.0
    %544 = vmatmul.mubr.f32.gmra.mxu0 %v412
    %v545 = vpop.f32.mrf.mxu0
    %v546 = vadd.f32 %v378, %v545
    %v547 = vpop.f32.mrf.mxu0
    %548 = vmatprep.mubr.f32.mxu0 0.0
    %549 = vmatmul.mubr.f32.gmra.mxu0 %v415
    %v550 = vpop.f32.mrf.mxu0
    %v551 = vadd.f32 %v378, %v550
    %v552 = vpop.f32.mrf.mxu0
    %553 = vmatprep.mubr.f32.mxu0 0.0
    %554 = vmatmul.mubr.f32.gmra.mxu0 %v418
    %v555 = vpop.f32.mrf.mxu0
    %v556 = vadd.f32 %v378, %v555
    %v557 = vpop.f32.mrf.mxu0
    %558 = vmatprep.mubr.f32.mxu0 0.0
    %559 = vmatmul.mubr.f32.gmra.mxu0 %v421
    %v560 = vpop.f32.mrf.mxu0
    %v561 = vadd.f32 %v378, %v560
    %v562 = vpop.f32.mrf.mxu0
    %563 = vmatprep.mubr.f32.mxu0 0.0
    %564 = vmatmul.mubr.f32.gmra.mxu0 %v424
    %v565 = vpop.f32.mrf.mxu0
    %v566 = vadd.f32 %v378, %v565
    %v567 = vpop.f32.mrf.mxu0
    %568 = vmatprep.mubr.f32.mxu0 0.0
    %569 = vmatmul.mubr.f32.gmra.mxu0 %v427
    %v570 = vpop.f32.mrf.mxu0
    %v571 = vadd.f32 %v378, %v570
    %v572 = vpop.f32.mrf.mxu0
    %573 = vdwg.mxu0
    %v574 = vmax.f32 %v496, 0.0
    %v575 = vmax.f32 %v501, 0.0
    %v576 = vmax.f32 %v506, 0.0
    %v577 = vmax.f32 %v511, 0.0
    %v578 = vmax.f32 %v516, 0.0
    %v579 = vmax.f32 %v521, 0.0
    %v580 = vmax.f32 %v526, 0.0
    %v581 = vmax.f32 %v531, 0.0
    %v582 = vmax.f32 %v536, 0.0
    %v583 = vmax.f32 %v541, 0.0
    %v584 = vmax.f32 %v546, 0.0
    %v585 = vmax.f32 %v551, 0.0
    %v586 = vmax.f32 %v556, 0.0
    %v587 = vmax.f32 %v561, 0.0
    %v588 = vmax.f32 %v566, 0.0
    %v589 = vmax.f32 %v571, 0.0
    %v590 = vld [vmem:[%s6] sm:$0x1]
    %v592 = vlaneseq
    %v593 = vshrl.u32 %v592, 7
    %v594 = vsub.s32 0, %v593
    %v595 = vrot.slane %v590, %v594
    %v597 = vmul.f32 %v574, %v595
    %v598 = vmul.f32 %v575, %v595
    %v599 = vmul.f32 %v576, %v595
    %v600 = vmul.f32 %v577, %v595
    %v601 = vmul.f32 %v578, %v595
    %v602 = vmul.f32 %v579, %v595
    %v603 = vmul.f32 %v580, %v595
    %v604 = vmul.f32 %v581, %v595
    %v605 = vmul.f32 %v582, %v595
    %v606 = vmul.f32 %v583, %v595
    %v607 = vmul.f32 %v584, %v595
    %v608 = vmul.f32 %v585, %v595
    %v609 = vmul.f32 %v586, %v595
    %v610 = vmul.f32 %v587, %v595
    %v611 = vmul.f32 %v588, %v595
    %v612 = vmul.f32 %v589, %v595
    %v613 = vsel %vm380, %v597, 0.0
    %614 = vadd.xlane.f32.xlu0 %v613
    %v615 = vpop.xlane.xlu0 %614
    %v616 = vsel %vm380, %v598, 0.0
    %617 = vadd.xlane.f32.xlu0 %v616
    %v618 = vpop.xlane.xlu0 %617
    %v619 = vsel %vm380, %v599, 0.0
    %620 = vadd.xlane.f32.xlu0 %v619
    %v621 = vpop.xlane.xlu0 %620
    %v622 = vsel %vm380, %v600, 0.0
    %623 = vadd.xlane.f32.xlu0 %v622
    %v624 = vpop.xlane.xlu0 %623
    %v625 = vsel %vm380, %v601, 0.0
    %626 = vadd.xlane.f32.xlu0 %v625
    %v627 = vpop.xlane.xlu0 %626
    %v628 = vsel %vm380, %v602, 0.0
    %629 = vadd.xlane.f32.xlu0 %v628
    %v630 = vpop.xlane.xlu0 %629
    %v631 = vsel %vm380, %v603, 0.0
    %632 = vadd.xlane.f32.xlu0 %v631
    %v633 = vpop.xlane.xlu0 %632
    %v634 = vsel %vm380, %v604, 0.0
    %635 = vadd.xlane.f32.xlu0 %v634
    %v636 = vpop.xlane.xlu0 %635
    %v637 = vsel %vm380, %v605, 0.0
    %638 = vadd.xlane.f32.xlu0 %v637
    %v639 = vpop.xlane.xlu0 %638
    %v640 = vsel %vm380, %v606, 0.0
    %641 = vadd.xlane.f32.xlu0 %v640
    %v642 = vpop.xlane.xlu0 %641
    %v643 = vsel %vm380, %v607, 0.0
    %644 = vadd.xlane.f32.xlu0 %v643
    %v645 = vpop.xlane.xlu0 %644
    %v646 = vsel %vm380, %v608, 0.0
    %647 = vadd.xlane.f32.xlu0 %v646
    %v648 = vpop.xlane.xlu0 %647
    %v649 = vsel %vm380, %v609, 0.0
    %650 = vadd.xlane.f32.xlu0 %v649
    %v651 = vpop.xlane.xlu0 %650
    %v652 = vsel %vm380, %v610, 0.0
    %653 = vadd.xlane.f32.xlu0 %v652
    %v654 = vpop.xlane.xlu0 %653
    %v655 = vsel %vm380, %v611, 0.0
    %656 = vadd.xlane.f32.xlu0 %v655
    %v657 = vpop.xlane.xlu0 %656
    %v658 = vsel %vm380, %v612, 0.0
    %659 = vadd.xlane.f32.xlu0 %v658
    %v660 = vpop.xlane.xlu0 %659
    %s661 = sld [smem:[#allocation2]]
    %v662 = vstv %s661
    %v663 = vadd.f32 %v615, %v662
    %v664 = vadd.f32 %v618, %v662
    %v665 = vadd.f32 %v621, %v662
    %v666 = vadd.f32 %v624, %v662
    %v667 = vadd.f32 %v627, %v662
    %v668 = vadd.f32 %v630, %v662
    %v669 = vadd.f32 %v633, %v662
    %v670 = vadd.f32 %v636, %v662
    %v671 = vadd.f32 %v639, %v662
    %v672 = vadd.f32 %v642, %v662
    %v673 = vadd.f32 %v645, %v662
    %v674 = vadd.f32 %v648, %v662
    %v675 = vadd.f32 %v651, %v662
    %v676 = vadd.f32 %v654, %v662
    %v677 = vadd.f32 %v657, %v662
    %v678 = vadd.f32 %v660, %v662
    %679 = vxpose.xlu0.b32.start [1/16] %v663, 128
    %680 = vxpose.xlu0.b32.cont [2/16] %v664, 128
    %681 = vxpose.xlu0.b32.cont [3/16] %v665, 128
    %682 = vxpose.xlu0.b32.cont [4/16] %v666, 128
    %683 = vxpose.xlu0.b32.cont [5/16] %v667, 128
    %684 = vxpose.xlu0.b32.cont [6/16] %v668, 128
    %685 = vxpose.xlu0.b32.cont [7/16] %v669, 128
    %686 = vxpose.xlu0.b32.cont [8/16] %v670, 128
    %687 = vxpose.xlu0.b32.cont [9/16] %v671, 128
    %688 = vxpose.xlu0.b32.cont [10/16] %v672, 128
    %689 = vxpose.xlu0.b32.cont [11/16] %v673, 128
    %690 = vxpose.xlu0.b32.cont [12/16] %v674, 128
    %691 = vxpose.xlu0.b32.cont [13/16] %v675, 128
    %692 = vxpose.xlu0.b32.cont [14/16] %v676, 128
    %693 = vxpose.xlu0.b32.cont [15/16] %v677, 128
    %694 = vxpose.xlu0.b32.end [16/16] %v678, 128
    %v695 = vpop.trf.xlu0
    %v696 = vpop.trf.xlu0
    %v697 = vpop.trf.xlu0
    %v698 = vpop.trf.xlu0
    %v699 = vpop.trf.xlu0
    %v700 = vpop.trf.xlu0
    %v701 = vpop.trf.xlu0
    %v702 = vpop.trf.xlu0
    %v703 = vpop.trf.xlu0
    %v704 = vpop.trf.xlu0
    %v705 = vpop.trf.xlu0
    %v706 = vpop.trf.xlu0
    %v707 = vpop.trf.xlu0
    %v708 = vpop.trf.xlu0
    %v709 = vpop.trf.xlu0
    %v710 = vpop.trf.xlu0
    %711 = vst [vmem:[#allocation3] sm:$0x1] %v695
    // Predicated region
    $region34: #{tpu_custom_call.1} parent=1 // pred_check
      _
    $region35: #{tpu_custom_call.1} parent=1 // pred_check_branch
      %713 = sbr.rel (0) target = $region37
    $region36: #{tpu_custom_call.1} parent=1 // pred_region
      %s715 = ssub.s32 16, 16
      %716 = vsyncadd [#allocation4], %s715
      %s718 = sshll.u32 [#allocation3], 4
      %s719 = int_to_ptr.vmem [resolvable:$true] %s718
      %721 = dma.vmem_to_hbm [thread:$0]  %s719, 16, %s8, [#allocation4]
    $region37: #{tpu_custom_call.1} parent=1 // pred_fallthru
      _
    // Predicated region
    $region38: #{tpu_custom_call.1} parent=1 // pred_check
      _
    $region39: #{tpu_custom_call.1} parent=1 // pred_check_branch
      %723 = sbr.rel (0) target = $region41
    $region40: #{tpu_custom_call.1} parent=1 // pred_region
      %724 = dma.done [#allocation4], 16
    $region41: #{tpu_custom_call.1} parent=1 // pred_fallthru
      _
    %725 = vsyncpa [#allocation4], 1

</llo_original>
